<compile_context>
chip_gen: v6e
topology: v6e:2x2x1
jax: 0.10.0
libtpu: 0.0.40
codegen_flags: <defaults>
</compile_context>

<pallas_src>
import jax
import jax.numpy as jnp
from jax.experimental import pallas as pl
from jax.experimental.pallas import tpu as pltpu

LANES = 1024    # lane-dense minor dim (multiple of 128) -> unmasked full-width stores
TILE_R = 512    # 512 * 1024 * 4 B = 2 MiB per tile


def _binary_act_kernel(slope_ref, x_ref, o_ref):
    # slope_ref: SMEM (1,) f32 scalar (scalar prefetch)
    # x_ref / o_ref: VMEM (tile_r, LANES) f32 tiles
    s = slope_ref[0]
    z = s * x_ref[...]
    # Hardsigmoid: (hardtanh(z) + 1) / 2
    h = (jnp.clip(z, -1.0, 1.0) + 1.0) * 0.5
    # RoundST forward: round to {0, 1} (ties-to-even, matching torch.round)
    o_ref[...] = jnp.round(h)


def deterministic_binary_activation(x, slope):
    """x: any-shape f32 array (e.g. NCHW). slope: scalar. Returns same shape, values in {0,1}."""
    orig_shape = x.shape
    n_total = x.size
    flat = x.reshape(-1).astype(jnp.float32)

    # Lane-dense 2D view (rows, LANES), tiled along rows.
    rows = -(-n_total // LANES)               # ceil(n_total / LANES)
    if rows <= TILE_R:
        tile_r = max(rows, 1)                 # single full-array block (always legal)
        rows = tile_r
    else:
        tile_r = TILE_R                       # multiple of 8 sublanes
        rows = -(-rows // tile_r) * tile_r    # round rows up -> no partial tail block

    padded = rows * LANES
    if padded != n_total:
        flat = jnp.pad(flat, (0, padded - n_total))
    x2d = flat.reshape(rows, LANES)

    slope_arr = jnp.asarray(slope, dtype=jnp.float32).reshape(1)
    grid = (rows // tile_r,)

    out2d = pl.pallas_call(
        _binary_act_kernel,
        out_shape=jax.ShapeDtypeStruct((rows, LANES), jnp.float32),
        grid_spec=pltpu.PrefetchScalarGridSpec(
            num_scalar_prefetch=1,            # slope lands in SMEM before the grid runs
            grid=grid,
            in_specs=[pl.BlockSpec((tile_r, LANES), lambda i, slope: (i, 0))],
            out_specs=pl.BlockSpec((tile_r, LANES), lambda i, slope: (i, 0)),
        ),
        compiler_params=pltpu.CompilerParams(
            dimension_semantics=("parallel",),  # independent blocks; enables v7x megacore sharding
        ),
    )(slope_arr, x2d)

    return out2d.reshape(-1)[:n_total].reshape(orig_shape)


if __name__ == "__main__":
    key = jax.random.PRNGKey(0)
    # Small NCHW input consistent with a conv-style feature map.
    x = jax.random.normal(key, (2, 4, 16, 16), dtype=jnp.float32)
    slope = 1.0  # typical slope passed alongside x in the (x, slope) tuple

    out = deterministic_binary_activation(x, slope)
    out = jax.block_until_ready(out)

    # Sanity checks against a pure-JAX reference of the same math.
    ref = jnp.round((jnp.clip(slope * x, -1.0, 1.0) + 1.0) * 0.5)
    assert out.shape == x.shape
    assert bool(jnp.all((out == 0.0) | (out == 1.0)))
    assert bool(jnp.allclose(out, ref))

    print("KERNEL_OK")
</pallas_src>

<mosaic_0001>
module attributes {stable_mosaic.version = 11 : i64} {
  func.func @_binary_act_kernel(%arg0: i32, %arg1: memref<1xf32, #tpu.memory_space<smem>>, %arg2: memref<2x1024xf32, #tpu.memory_space<vmem>>, %arg3: memref<2x1024xf32, #tpu.memory_space<vmem>>) attributes {dimension_semantics = [#tpu.dimension_semantics<parallel>], iteration_bounds = array<i64: 1>, scalar_prefetch = 1 : i64, scratch_operands = 0 : i64, tpu.core_type = #tpu.core_type<tc>, window_params = [{transform_indices = @transform_0, window_bounds = array<i64: 2, 1024>}, {transform_indices = @transform_1, window_bounds = array<i64: 2, 1024>}]} {
    %c0 = arith.constant 0 : index
    %0 = memref.load %arg1[%c0] : memref<1xf32, #tpu.memory_space<smem>>
    %c0_0 = arith.constant 0 : index
    %c0_1 = arith.constant 0 : index
    %1 = vector.load %arg2[%c0_0, %c0_1] : memref<2x1024xf32, #tpu.memory_space<vmem>>, vector<2x1024xf32>
    %2 = vector.broadcast %0 : f32 to vector<2x1024xf32>
    %3 = arith.mulf %2, %1 : vector<2x1024xf32>
    %cst = arith.constant -1.000000e+00 : f32
    %cst_2 = arith.constant 1.000000e+00 : f32
    %4 = vector.broadcast %cst : f32 to vector<2x1024xf32>
    %5 = arith.maximumf %4, %3 : vector<2x1024xf32>
    %6 = vector.broadcast %cst_2 : f32 to vector<2x1024xf32>
    %7 = arith.minimumf %6, %5 : vector<2x1024xf32>
    %cst_3 = arith.constant 1.000000e+00 : f32
    %8 = vector.broadcast %cst_3 : f32 to vector<2x1024xf32>
    %9 = arith.addf %7, %8 : vector<2x1024xf32>
    %cst_4 = arith.constant 5.000000e-01 : f32
    %10 = vector.broadcast %cst_4 : f32 to vector<2x1024xf32>
    %11 = arith.mulf %9, %10 : vector<2x1024xf32>
    %12 = math.roundeven %11 : vector<2x1024xf32>
    %c0_5 = arith.constant 0 : index
    %c0_6 = arith.constant 0 : index
    %13 = vector.load %arg3[%c0_5, %c0_6] : memref<2x1024xf32, #tpu.memory_space<vmem>>, vector<2x1024xf32>
    tpu.vector_store %arg3[%c0_5, %c0_6], %12 {strides = array<i32>} : memref<2x1024xf32, #tpu.memory_space<vmem>>, vector<2x1024xf32>,
    return
  }
  func.func @transform_0(%arg0: i32, %arg1: memref<1xf32, #tpu.memory_space<smem>>) -> (i32, i32) {
    %c0_i32 = arith.constant 0 : i32
    %c0_i32_0 = arith.constant 0 : i32
    return %arg0, %c0_i32 : i32, i32
  }
  func.func @transform_1(%arg0: i32, %arg1: memref<1xf32, #tpu.memory_space<smem>>) -> (i32, i32) {
    %c0_i32 = arith.constant 0 : i32
    %c0_i32_0 = arith.constant 0 : i32
    return %arg0, %c0_i32 : i32, i32
  }
}

</mosaic_0001>

<llo_original>
// kernel: tpu_custom_call.1
$region0: #{tpu_custom_call.1}
  #allocation0 [shape = 'u32[]', space=smem, size = 0x4, offset = 0x4, fixed_abs, tag = 'smem constant byte address 0x4 - core index']
  #allocation1 [shape = 'u32[144,128]{1,0:T(1,128)}', space=vmem, size = 0x12000, scoped, tag = 'internal scratch']
  #allocation2 [shape = 's32[1]{0}', space=sflag, size = 0x4, scoped, tag = 'scoped memory for tpu_custom_call.1']
  #allocation3 [shape = 'f32[1]{0:T(128)S(6)}', space=smem, size = 0x200, scoped, tag = 'prefetched SMEM operand 0']
  %s0 = inlined_call_operand.<no memory space> [shape: f32[1], index: 0, kind: input, shape index: {}]
  %s1 = inlined_call_operand.hbm [shape: f32[2,1024], index: 1, kind: input, shape index: {}]
  %s2 = inlined_call_operand.hbm [shape: f32[2,1024], index: 2, kind: output, shape index: {}]
  %s3 = sld [smem:[#allocation0]]
  $region18: #{tpu_custom_call.1} parent=0
    _
  %s5 = ssub.s32 1, %s3
  %s6 = scalar_select 0, %s5, %s3
  %7 = sst [smem:[#allocation3]] %s0
  $region1: #{tpu_custom_call.1} parent=0
    #allocation4 [shape = 'u8[8192]{0}', space=vmem, size = 0x2000, scoped, tag = 'input window, operand 1, single buffered']
    #allocation5 [shape = 's32[1]{0}', space=sflag, size = 0x4, scoped, tag = 'scoped memory for tpu_custom_call.1']
    #allocation6 [shape = 's32[1]{0}', space=sflag, size = 0x4, scoped, tag = 'scoped memory for tpu_custom_call.1']
    #allocation7 [shape = 'u8[8192]{0}', space=vmem, size = 0x2000, scoped, tag = 'output window, operand 0, single buffered']
    %8 = vsyncpa [#allocation5], 0
    %9 = vsyncpa [#allocation6], 0
    // Predicated region
    $region2: #{tpu_custom_call.1} parent=1 // pred_check
      _
    $region3: #{tpu_custom_call.1} parent=1 // pred_check_branch
      %11 = sbr.rel (0) target = $region5
    $region4: #{tpu_custom_call.1} parent=1 // pred_region
      %s13 = ssub.s32 256, 256
      %14 = vsyncadd [#allocation5], %s13
      %s16 = sshll.u32 [#allocation4], 4
      %s17 = int_to_ptr.vmem [resolvable:$true] %s16
      %19 = dma.hbm_to_vmem [thread:$0]  %s1, 256, %s17, [#allocation5]
    $region5: #{tpu_custom_call.1} parent=1 // pred_fallthru
      _
    // Predicated region
    $region6: #{tpu_custom_call.1} parent=1 // pred_check
      _
    $region7: #{tpu_custom_call.1} parent=1 // pred_check_branch
      %21 = sbr.rel (0) target = $region9
    $region8: #{tpu_custom_call.1} parent=1 // pred_region
      %22 = dma.done [#allocation5], 256
    $region9: #{tpu_custom_call.1} parent=1 // pred_fallthru
      _
    %s23 = sld [smem:[#allocation3]]
    %v24 = vld [vmem:[#allocation4] sm:$0xff]
    %v25 = vld [vmem:[#allocation4 + $0x8] sm:$0xff]
    %v26 = vstv %s23
    %v27 = vmul.f32 %v26, %v24
    %v28 = vmul.f32 %v26, %v25
    %v29 = vmax.f32 %v27, -1.0
    %v30 = vmax.f32 %v28, -1.0
    %v31 = vmin.f32 %v29, 1.0
    %v32 = vmin.f32 %v30, 1.0
    %v33 = vadd.f32 %v31, 1.0
    %v34 = vadd.f32 %v32, 1.0
    %v35 = vmul.f32 %v33, 0.5
    %v36 = vmul.f32 %v34, 0.5
    %v37 = vround.ne.pseudo %v35
    %v38 = vround.ne.pseudo %v36
    %39 = vst [vmem:[#allocation7] sm:$0xff] %v37
    %40 = vst [vmem:[#allocation7 + $0x8] sm:$0xff] %v38
    // Predicated region
    $region10: #{tpu_custom_call.1} parent=1 // pred_check
      _
    $region11: #{tpu_custom_call.1} parent=1 // pred_check_branch
      %42 = sbr.rel (0) target = $region13
    $region12: #{tpu_custom_call.1} parent=1 // pred_region
      %s44 = ssub.s32 256, 256
      %45 = vsyncadd [#allocation6], %s44
      %s47 = sshll.u32 [#allocation7], 4
      %s48 = int_to_ptr.vmem [resolvable:$true] %s47
      %50 = dma.vmem_to_hbm [thread:$0]  %s48, 256, %s2, [#allocation6]
    $region13: #{tpu_custom_call.1} parent=1 // pred_fallthru
      _
    // Predicated region
    $region14: #{tpu_custom_call.1} parent=1 // pred_check
      _
    $region15: #{tpu_custom_call.1} parent=1 // pred_check_branch
      %52 = sbr.rel (0) target = $region17
    $region16: #{tpu_custom_call.1} parent=1 // pred_region
      %53 = dma.done [#allocation6], 256
    $region17: #{tpu_custom_call.1} parent=1 // pred_fallthru
      _
    %54 = vsyncpa [#allocation5], 1
    %55 = vsyncpa [#allocation6], 1

</llo_original>
